<compile_context>
chip_gen: v7x
topology: tpu7x:2x2x1
jax: 0.10.0
libtpu: 0.0.40
codegen_flags: <defaults>
</compile_context>

<pallas_src>
import numpy as np
import jax
import jax.numpy as jnp
from jax.experimental import pallas as pl
from jax.experimental.pallas import tpu as pltpu


def _conv2d_kernel(x_ref, t_ref, o_ref):
    # x_ref: (block_m, k*W*C)   im2col rows (kh taps + channels on lanes)
    # t_ref: (k*W*C, W_out*O)   Toeplitz-expanded weights (resident)
    # o_ref: (block_m, W_out*O) lane-dense output slab (full 128-lane rows)
    o_ref[...] = jnp.dot(
        x_ref[...], t_ref[...], preferred_element_type=jnp.float32
    ).astype(o_ref.dtype)


def _toeplitz_weights(w_oihw, W, W_out, padding):
    """T2[kh*W*C + w_in*C + c, w*O + o] = w[o, c, kh, w_in - w + p]
    (zero where the kw tap falls outside [0, k)).  Pure gather + mask, no dot,
    so the weights are reproduced exactly; W-padding becomes zero bands."""
    O, C, k, _ = w_oihw.shape
    v_idx = np.arange(W, dtype=np.int32)[:, None]        # w_in
    w_idx = np.arange(W_out, dtype=np.int32)[None, :]    # output w
    kw_idx = v_idx - w_idx + padding                      # (W, W_out)
    valid = (kw_idx >= 0) & (kw_idx < k)
    kw_clip = np.clip(kw_idx, 0, k - 1).astype(np.int32)

    t = jnp.take(w_oihw, jnp.asarray(kw_clip), axis=3)     # (O, C, k, W, W_out)
    t = jnp.where(jnp.asarray(valid)[None, None, None], t, 0)
    t = jnp.transpose(t, (2, 3, 1, 4, 0))                  # (k, W, C, W_out, O)
    return t.reshape(k * W * C, W_out * O)


def _pick_block_m(m, target=512):
    """Largest multiple of 8 that divides m and is <= target (else m itself)."""
    if m <= target or m % 8 != 0:
        return m
    bm = target - (target % 8)
    while bm >= 8:
        if m % bm == 0:
            return bm
        bm -= 8
    return m


def make_conv2d(w_oihw, H, W, padding, *, compute_dtype=None, block_m_target=512):
    """Precompute the Toeplitz weight slab once (hoisted across calls) and
    return (apply_nchw, apply_cl) jitted forward functions.

    apply_cl  : (N, H, W, C) channels-last -> (N, H_out, W_out, O)
    apply_nchw: (N, C, H, W) PyTorch layout -> (N, O, H_out, W_out)
    """
    O, C, k, kw_ = w_oihw.shape
    assert k == kw_, "square kernel expected"
    # TODO(synk): only stride=1, dilation=1, groups=1, bias=False are
    # implemented (exactly what the reference module uses).
    p = padding
    H_out = H + 2 * p - k + 1
    W_out = W + 2 * p - k + 1
    assert H_out > 0 and W_out > 0

    t2 = _toeplitz_weights(w_oihw, W, W_out, p)            # (k*W*C, W_out*O)
    if compute_dtype is not None:
        t2 = t2.astype(compute_dtype)
    t2 = jax.device_put(t2)                                # built once, reused

    K = k * W * C
    NO = W_out * O

    @jax.jit
    def _apply_cl(x_nhwc, t2_arg):
        N = x_nhwc.shape[0]
        out_dtype = x_nhwc.dtype
        xh = x_nhwc.reshape(N, H, W * C)
        if compute_dtype is not None:
            xh = xh.astype(compute_dtype)
        # Only H is padded here (fuses into the relayout copy); W-padding lives
        # in the zero bands of t2.
        xh = jnp.pad(xh, ((0, 0), (p, p), (0, 0)))
        # Host-side im2col over kh only: (N, H_out, k*W*C), kh-major on lanes.
        lhs = jnp.concatenate([xh[:, kh:kh + H_out, :] for kh in range(k)],
                              axis=-1)
        M = N * H_out
        lhs2 = lhs.reshape(M, K)

        block_m = _pick_block_m(M, block_m_target)
        grid = (M // block_m,)

        out2d = pl.pallas_call(
            _conv2d_kernel,
            out_shape=jax.ShapeDtypeStruct((M, NO), out_dtype),
            grid=grid,
            in_specs=[
                pl.BlockSpec((block_m, K), lambda i: (i, 0)),
                # Constant index_map -> weight slab DMA'd once, stays resident.
                pl.BlockSpec((K, NO), lambda i: (0, 0)),
            ],
            out_specs=pl.BlockSpec((block_m, NO), lambda i: (i, 0)),
            compiler_params=pltpu.CompilerParams(
                # Blocks along M are independent -> megacore-shardable on v7x;
                # no-op on single-TC v5e/v6e.
                dimension_semantics=("parallel",)),
        )(lhs2, t2_arg)

        # Rows are (n, h), columns are (w, o).
        return out2d.reshape(N, H_out, W_out, O)

    def apply_cl(x_nhwc):
        return _apply_cl(x_nhwc, t2)

    @jax.jit
    def apply_nchw(x_nchw):
        x_nhwc = jnp.transpose(x_nchw, (0, 2, 3, 1))
        y = _apply_cl(x_nhwc, t2)
        return jnp.transpose(y, (0, 3, 1, 2))

    return apply_nchw, apply_cl


if __name__ == "__main__":
    # Module config: Conv2d(in_planes=4, out_planes=8, kernel=3, padding=1)
    in_planes, out_planes, kernel, padding = 4, 8, 3, 1
    N, H, W = 2, 16, 16

    key = jax.random.PRNGKey(0)
    kx, kw_key = jax.random.split(key)

    x = jax.random.normal(kx, (N, in_planes, H, W), dtype=jnp.float32)

    # Deterministic weight init mimicking nn.Conv2d's kaiming-uniform bound:
    # U(-1/sqrt(fan_in), 1/sqrt(fan_in)), fan_in = C * k * k.  Shape = OIHW.
    fan_in = in_planes * kernel * kernel
    bound = 1.0 / float(np.sqrt(fan_in))
    w = jax.random.uniform(
        kw_key, (out_planes, in_planes, kernel, kernel),
        minval=-bound, maxval=bound, dtype=jnp.float32,
    )

    # Build once (T2 hoisted across calls); f32 compute at this toy size.
    # For larger convs on v6e/v7x pass compute_dtype=jnp.bfloat16.
    conv_nchw, _conv_cl = make_conv2d(w, H, W, padding, compute_dtype=None)

    out = conv_nchw(x)
    out = jax.block_until_ready(out)

    # Sanity check against XLA's conv (same semantics as F.conv2d, bias=False).
    ref = jax.lax.conv_general_dilated(
        x, w, window_strides=(1, 1), padding=[(padding, padding)] * 2,
        dimension_numbers=("NCHW", "OIHW", "NCHW"),
        precision=jax.lax.Precision.HIGHEST,
    )
    assert out.shape == (N, out_planes, H, W), out.shape
    assert jnp.allclose(out, ref, atol=1e-3, rtol=1e-3), float(
        jnp.max(jnp.abs(out - ref)))

    print("KERNEL_OK")
</pallas_src>

<mosaic_0001>
module attributes {stable_mosaic.version = 11 : i64} {
  func.func @_conv2d_kernel(%arg0: i32, %arg1: memref<32x192xf32, #tpu.memory_space<vmem>>, %arg2: memref<192x128xf32, #tpu.memory_space<vmem>>, %arg3: memref<32x128xf32, #tpu.memory_space<vmem>>) attributes {dimension_semantics = [#tpu.dimension_semantics<parallel>], iteration_bounds = array<i64: 1>, scalar_prefetch = 0 : i64, scratch_operands = 0 : i64, tpu.core_type = #tpu.core_type<tc>, window_params = [{transform_indices = @transform_0, window_bounds = array<i64: 32, 192>}, {pipeline_mode = #tpu.pipeline_mode<synchronous>, transform_indices = @transform_1, window_bounds = array<i64: 192, 128>}, {transform_indices = @transform_2, window_bounds = array<i64: 32, 128>}]} {
    %c0 = arith.constant 0 : index
    %c0_0 = arith.constant 0 : index
    %0 = vector.load %arg1[%c0, %c0_0] : memref<32x192xf32, #tpu.memory_space<vmem>>, vector<32x192xf32>
    %c0_1 = arith.constant 0 : index
    %c0_2 = arith.constant 0 : index
    %1 = vector.load %arg2[%c0_1, %c0_2] : memref<192x128xf32, #tpu.memory_space<vmem>>, vector<192x128xf32>
    %cst = arith.constant dense<0.000000e+00> : vector<32x128xf32>
    %2 = tpu.matmul %0, %1, %cst {dimension_numbers = #tpu.dot_dimension_numbers<[1], [0], [0], [1], [0, 0, 1, 1], [], []>} : vector<32x192xf32>, vector<192x128xf32>, vector<32x128xf32> -> vector<32x128xf32>
    %c0_3 = arith.constant 0 : index
    %c0_4 = arith.constant 0 : index
    %3 = vector.load %arg3[%c0_3, %c0_4] : memref<32x128xf32, #tpu.memory_space<vmem>>, vector<32x128xf32>
    tpu.vector_store %arg3[%c0_3, %c0_4], %2 {strides = array<i32>} : memref<32x128xf32, #tpu.memory_space<vmem>>, vector<32x128xf32>,
    return
  }
  func.func @transform_0(%arg0: i32) -> (i32, i32) {
    %c0_i32 = arith.constant 0 : i32
    %c0_i32_0 = arith.constant 0 : i32
    return %arg0, %c0_i32 : i32, i32
  }
  func.func @transform_1(%arg0: i32) -> (i32, i32) {
    %c0_i32 = arith.constant 0 : i32
    %c0_i32_0 = arith.constant 0 : i32
    %c0_i32_1 = arith.constant 0 : i32
    return %c0_i32, %c0_i32_0 : i32, i32
  }
  func.func @transform_2(%arg0: i32) -> (i32, i32) {
    %c0_i32 = arith.constant 0 : i32
    %c0_i32_0 = arith.constant 0 : i32
    return %arg0, %c0_i32 : i32, i32
  }
}

</mosaic_0001>

<llo_original>
// kernel: _apply_cl.1
$region0: #{_apply_cl.1}
  #allocation0 [shape = 'u32[]', space=smem, size = 0x4, offset = 0x4, fixed_abs, tag = 'smem constant byte address 0x4 - core index']
  #allocation1 [shape = 'u32[144,128]{1,0:T(1,128)}', space=vmem, size = 0x12000, scoped, tag = 'internal scratch']
  %s0 = inlined_call_operand.vmem [shape: f32[32,192], index: 0, kind: input, shape index: {}]
  %s1 = inlined_call_operand.vmem [shape: f32[192,128], index: 1, kind: input, shape index: {}]
  %s2 = inlined_call_operand.vmem [shape: f32[32,128], index: 2, kind: output, shape index: {}]
  %s3 = sld [smem:[#allocation0]]
  $region18: #{_apply_cl.1} parent=0
    _
  %s5 = ssub.s32 1, %s3
  %s6 = scalar_select 0, %s5, %s3
  // Predicated region
  $region2: #{_apply_cl.1} parent=0 // pred_check
    _
  $region3: #{_apply_cl.1} parent=0 // pred_check_branch
    %8 = sbr.rel (0) target = $region5
  $region4: #{_apply_cl.1} parent=0 // pred_region
    _
  $region5: #{_apply_cl.1} parent=0 // pred_fallthru
    _
  // Predicated region
  $region6: #{_apply_cl.1} parent=0 // pred_check
    _
  $region7: #{_apply_cl.1} parent=0 // pred_check_branch
    %10 = sbr.rel (0) target = $region9
  $region8: #{_apply_cl.1} parent=0 // pred_region
    _
  $region9: #{_apply_cl.1} parent=0 // pred_fallthru
    _
  %v11 = vld [vmem:[%s0] sm:$0xff]
  %v12 = vld [vmem:[%s0 + $0x8] sm:$0xff]
  %v13 = vld [vmem:[%s0 + $0x10] sm:$0xff]
  %v14 = vld [vmem:[%s0 + $0x18] sm:$0xff]
  %v15 = vld [vmem:[%s0 + $0x20] sm:$0xff]
  %v16 = vld [vmem:[%s0 + $0x28] sm:$0xff]
  %v17 = vld [vmem:[%s0 + $0x30] sm:$0xff]
  %v18 = vld [vmem:[%s0 + $0x38] sm:$0xff]
  %v19 = vld [vmem:[%s1] sm:$0xff]
  %v20 = vld [vmem:[%s1 + $0x8] sm:$0xff]
  %v21 = vld [vmem:[%s1 + $0x10] sm:$0xff]
  %v22 = vld [vmem:[%s1 + $0x18] sm:$0xff]
  %v23 = vld [vmem:[%s1 + $0x20] sm:$0xff]
  %v24 = vld [vmem:[%s1 + $0x28] sm:$0xff]
  %v25 = vld [vmem:[%s1 + $0x30] sm:$0xff]
  %v26 = vld [vmem:[%s1 + $0x38] sm:$0xff]
  %v27 = vld [vmem:[%s1 + $0x40] sm:$0xff]
  %v28 = vld [vmem:[%s1 + $0x48] sm:$0xff]
  %v29 = vld [vmem:[%s1 + $0x50] sm:$0xff]
  %v30 = vld [vmem:[%s1 + $0x58] sm:$0xff]
  %v31 = vld [vmem:[%s1 + $0x60] sm:$0xff]
  %v32 = vld [vmem:[%s1 + $0x68] sm:$0xff]
  %v33 = vld [vmem:[%s1 + $0x70] sm:$0xff]
  %v34 = vld [vmem:[%s1 + $0x78] sm:$0xff]
  %v35 = vld [vmem:[%s1 + $0x80] sm:$0xff]
  %v36 = vld [vmem:[%s1 + $0x88] sm:$0xff]
  %v37 = vld [vmem:[%s1 + $0x90] sm:$0xff]
  %v38 = vld [vmem:[%s1 + $0x98] sm:$0xff]
  %v39 = vld [vmem:[%s1 + $0xa0] sm:$0xff]
  %v40 = vld [vmem:[%s1 + $0xa8] sm:$0xff]
  %v41 = vld [vmem:[%s1 + $0xb0] sm:$0xff]
  %v42 = vld [vmem:[%s1 + $0xb8] sm:$0xff]
  %vm43 = vcmask 523264
  %v45 = vsel %vm43, %v12, 0
  %v48 = vsel %vm43, %v14, 0
  %v51 = vsel %vm43, %v16, 0
  %v54 = vsel %vm43, %v18, 0
  %56 = vmatprep.subr.mxu0 0.0
  %57 = vmatpush1.msra.mxu0 %v19
  %58 = vmatprep.subr.mxu0 0.0
  %59 = vmatpush1.msra.mxu0 %v20
  %60 = vmatprep.subr.mxu0 0.0
  %61 = vmatpush1.msra.mxu0 %v21
  %62 = vmatprep.subr.mxu0 0.0
  %63 = vmatpush1.msra.mxu0 %v22
  %64 = vmatprep.subr.mxu0 0.0
  %65 = vmatpush1.msra.mxu0 %v23
  %66 = vmatprep.subr.mxu0 0.0
  %67 = vmatpush1.msra.mxu0 %v24
  %68 = vmatprep.subr.mxu0 0.0
  %69 = vmatpush1.msra.mxu0 %v25
  %70 = vmatprep.subr.mxu0 0.0
  %71 = vmatpush1.msra.mxu0 %v26
  %72 = vmatprep.subr.mxu0 0.0
  %73 = vmatpush1.msra.mxu0 %v27
  %74 = vmatprep.subr.mxu0 0.0
  %75 = vmatpush1.msra.mxu0 %v28
  %76 = vmatprep.subr.mxu0 0.0
  %77 = vmatpush1.msra.mxu0 %v29
  %78 = vmatprep.subr.mxu0 0.0
  %79 = vmatpush1.msra.mxu0 %v30
  %80 = vmatprep.subr.mxu0 0.0
  %81 = vmatpush1.msra.mxu0 %v31
  %82 = vmatprep.subr.mxu0 0.0
  %83 = vmatpush1.msra.mxu0 %v32
  %84 = vmatprep.subr.mxu0 0.0
  %85 = vmatpush1.msra.mxu0 %v33
  %86 = vmatprep.subr.mxu0 0.0
  %87 = vmatpush1.msra.mxu0 %v34
  %88 = vmatprep.subr.mxu0 0.0
  %89 = vmatpush1.msra.mxu0 %v35
  %90 = vmatprep.subr.mxu0 0.0
  %91 = vmatpush1.msra.mxu0 %v36
  %92 = vmatprep.subr.mxu0 0.0
  %93 = vmatpush1.msra.mxu0 %v37
  %94 = vmatprep.subr.mxu0 0.0
  %95 = vmatpush1.msra.mxu0 %v38
  %96 = vmatprep.subr.mxu0 0.0
  %97 = vmatpush1.msra.mxu0 %v39
  %98 = vmatprep.subr.mxu0 0.0
  %99 = vmatpush1.msra.mxu0 %v40
  %100 = vmatprep.subr.mxu0 0.0
  %101 = vmatpush1.msra.mxu0 %v41
  %102 = vmatprep.subr.mxu0 0.0
  %103 = vmatpush1.msra.mxu0 %v42
  %104 = vmatprep.subr.mxu0 0.0
  %105 = vmatpush1.msra.mxu0 0.0
  %106 = vmatprep.subr.mxu0 0.0
  %107 = vmatpush1.msra.mxu0 0.0
  %108 = vmatprep.subr.mxu0 0.0
  %109 = vmatpush1.msra.mxu0 0.0
  %110 = vmatprep.subr.mxu0 0.0
  %111 = vmatpush1.msra.mxu0 0.0
  %112 = vmatprep.subr.mxu0 0.0
  %113 = vmatpush1.msra.mxu0 0.0
  %114 = vmatprep.subr.mxu0 0.0
  %115 = vmatpush1.msra.mxu0 0.0
  %116 = vmatprep.subr.mxu0 0.0
  %117 = vmatpush1.msra.mxu0 0.0
  %118 = vmatprep.subr.mxu0 0.0
  %119 = vmatpush1.msra.mxu0 0.0
  %120 = vmatprep.mubr.f32.mxu0 %v45
  %121 = vmatmul.mubr.f32.gmra.mrb[0].mxu0 %v11
  %v122 = vpop.f32.mrb[0].mxu0
  %v123 = vadd.f32 0.0, %v122
  %v124 = vpop.f32.mrb[0].mxu0
  %125 = vmatprep.mubr.f32.mxu0 %v48
  %126 = vmatmul.mubr.f32.gmra.mrb[0].mxu0 %v13
  %v127 = vpop.f32.mrb[0].mxu0
  %v128 = vadd.f32 0.0, %v127
  %v129 = vpop.f32.mrb[0].mxu0
  %130 = vmatprep.mubr.f32.mxu0 %v51
  %131 = vmatmul.mubr.f32.gmra.mrb[0].mxu0 %v15
  %v132 = vpop.f32.mrb[0].mxu0
  %v133 = vadd.f32 0.0, %v132
  %v134 = vpop.f32.mrb[0].mxu0
  %135 = vmatprep.mubr.f32.mxu0 %v54
  %136 = vmatmul.mubr.f32.gmra.mrb[0].mxu0 %v17
  %v137 = vpop.f32.mrb[0].mxu0
  %v138 = vadd.f32 0.0, %v137
  %v139 = vpop.f32.mrb[0].mxu0
  %140 = vdwg.mxu0
  %141 = vst [vmem:[%s2] sm:$0xff] %v123
  %142 = vst [vmem:[%s2 + $0x8] sm:$0xff] %v128
  %143 = vst [vmem:[%s2 + $0x10] sm:$0xff] %v133
  %144 = vst [vmem:[%s2 + $0x18] sm:$0xff] %v138
  // Predicated region
  $region10: #{_apply_cl.1} parent=0 // pred_check
    _
  $region11: #{_apply_cl.1} parent=0 // pred_check_branch
    %146 = sbr.rel (0) target = $region13
  $region12: #{_apply_cl.1} parent=0 // pred_region
    _
  $region13: #{_apply_cl.1} parent=0 // pred_fallthru
    _
  // Predicated region
  $region14: #{_apply_cl.1} parent=0 // pred_check
    _
  $region15: #{_apply_cl.1} parent=0 // pred_check_branch
    %148 = sbr.rel (0) target = $region17
  $region16: #{_apply_cl.1} parent=0 // pred_region
    _
  $region17: #{_apply_cl.1} parent=0 // pred_fallthru
    _

</llo_original>
